<compile_context>
chip_gen: v6e
topology: v6e:2x2x1
jax: 0.10.0
libtpu: 0.0.40
codegen_flags: <defaults>
</compile_context>

<pallas_src>
import jax
import jax.numpy as jnp
from jax.experimental import pallas as pl
from jax.experimental.pallas import tpu as pltpu

_LANES = 128


def _policy_kernel(x_ref, w1t_ref, b1_ref, w2_ref, b2_ref, o_ref):
    x = x_ref[...]                      # (num_inp, TB)  f32, batch on lanes
    w1t = w1t_ref[...]                  # (H, num_inp)   f32
    w2 = w2_ref[...]                    # (H, num_out)   f32
    num_inp = x.shape[0]
    num_out = w2.shape[1]

    # ---- fc1 + ReLU on the VPU: num_inp broadcast FMAs over dense (H, TB). --
    h = b1_ref[...] + w1t[:, 0:1] * x[0:1, :]          # (H, TB)
    for i in range(1, num_inp):                         # static unroll, K=num_inp
        h = h + w1t[:, i:i + 1] * x[i:i + 1, :]
    h = jnp.maximum(h, 0.0)

    # ---- fc2 logits: per-action multiply + SUBLANE fold over H. -------------
    # (mostly VALU: H/8 vreg muls + adds per 128-lane column; tiny XLU tail)
    logits = []
    for j in range(num_out):                            # static unroll, N=num_out
        zj = jnp.sum(h * w2[:, j:j + 1], axis=0, keepdims=True)   # (1, TB)
        logits.append(zj + b2_ref[0, j])                # b2 scalar from SMEM

    # ---- softmax across the num_out rows (VPU + EUP, all lane-dense). -------
    m = logits[0]
    for j in range(1, num_out):
        m = jnp.maximum(m, logits[j])
    exps = [jnp.exp(l - m) for l in logits]
    denom = exps[0]
    for j in range(1, num_out):
        denom = denom + exps[j]
    r = pl.reciprocal(denom, approx=True)               # EUP slot (nearly free)
    r = r * (2.0 - denom * r)                           # one Newton step -> ~f32 exact

    # Single lane-dense store of the whole (num_out, TB) tile.
    o_ref[...] = jnp.concatenate([e * r for e in exps], axis=0)


def _round_up(n, m):
    return (n + m - 1) // m * m


def _cdiv(a, b):
    return (a + b - 1) // b


def policy_network_fc(x, w1, b1, w2, b2, *, block_rows=4096):
    """Forward pass of PolicyNetworkFC.

    x:  (B, num_inp) float32
    w1: (num_inp, 64),     b1: (64,)       -- fc1, stored (in_features, out_features)
    w2: (64, num_out),     b2: (num_out,)  -- fc2
    returns softmax probabilities, shape (B, num_out) float32
    """
    B, num_inp = x.shape
    hidden = w1.shape[1]
    num_out = w2.shape[1]

    # ---- adaptive tile selection (near-zero padding, few grid steps). -------
    n_tiles = max(1, _cdiv(B, block_rows))
    if n_tiles > 1:
        n_tiles = _round_up(n_tiles, 2)        # even split across v7x's 2 TCs
    tb = _round_up(_cdiv(B, n_tiles), _LANES)  # lane-dense tiles (multiple of 128)
    b_pad = n_tiles * tb

    # ---- feature-major (batch-on-lanes) layout prep in the wrapper. ---------
    # TODO(synk): callers that already hold activations feature-major can skip
    # these transposes entirely.
    x_fm = jnp.transpose(x)                               # (num_inp, B)
    if b_pad != B:
        x_fm = jnp.pad(x_fm, ((0, 0), (0, b_pad - B)))    # zero cols -> finite softmax

    w1t = jnp.transpose(w1)                               # (hidden, num_inp)
    b1c = b1.reshape(hidden, 1)                           # (hidden, 1)
    b2_2d = b2.reshape(1, num_out)                        # SMEM scalars

    out_fm = pl.pallas_call(
        _policy_kernel,
        out_shape=jax.ShapeDtypeStruct((num_out, b_pad), jnp.float32),
        grid=(n_tiles,),
        in_specs=[
            pl.BlockSpec((num_inp, tb), lambda i: (0, i)),       # batch tile (lanes)
            pl.BlockSpec((hidden, num_inp), lambda i: (0, 0)),   # VMEM-resident
            pl.BlockSpec((hidden, 1), lambda i: (0, 0)),         # VMEM-resident
            pl.BlockSpec((hidden, num_out), lambda i: (0, 0)),   # VMEM-resident
            pl.BlockSpec(memory_space=pltpu.MemorySpace.SMEM),   # b2 scalars
        ],
        out_specs=pl.BlockSpec((num_out, tb), lambda i: (0, i)),
        compiler_params=pltpu.CompilerParams(
            dimension_semantics=("parallel",),  # v7x: shard batch tiles over 2 TCs
        ),
    )(x_fm, w1t, b1c, w2, b2_2d)
    return jnp.transpose(out_fm)[:B]


def _init_linear(key, fan_in, fan_out):
    """Match nn.Linear default init: U(-1/sqrt(fan_in), 1/sqrt(fan_in))."""
    kw, kb = jax.random.split(key)
    bound = 1.0 / jnp.sqrt(jnp.float32(fan_in))
    w = jax.random.uniform(kw, (fan_in, fan_out), jnp.float32, -bound, bound)
    b = jax.random.uniform(kb, (fan_out,), jnp.float32, -bound, bound)
    return w, b


def _reference(x, w1, b1, w2, b2):
    logits = jnp.maximum(x @ w1 + b1, 0.0) @ w2 + b2
    return jax.nn.softmax(logits, axis=1)


if __name__ == "__main__":
    key = jax.random.PRNGKey(0)
    k_x, k_fc1, k_fc2, k_x2 = jax.random.split(key, 4)

    num_inp = 4     # CartPole observation dim
    hidden = 64     # nn.Linear(num_inp, 64)
    num_out = 2     # CartPole action dim

    w1, b1 = _init_linear(k_fc1, num_inp, hidden)
    w2, b2 = _init_linear(k_fc2, hidden, num_out)

    # Small deterministic check (single tile, tb=128).
    x = jax.random.normal(k_x, (8, num_inp), jnp.float32)
    out = jax.block_until_ready(policy_network_fc(x, w1, b1, w2, b2))
    ref = _reference(x, w1, b1, w2, b2)
    assert out.shape == (8, num_out)
    assert jnp.allclose(out, ref, atol=1e-5, rtol=1e-5)
    assert jnp.allclose(out.sum(axis=1), 1.0, atol=1e-5)

    # Larger non-multiple batch: single-tile fast path (1037 -> tb=1152, 11% pad).
    xb = jax.random.normal(k_x2, (1037, num_inp), jnp.float32)
    outb = jax.block_until_ready(policy_network_fc(xb, w1, b1, w2, b2))
    refb = _reference(xb, w1, b1, w2, b2)
    assert outb.shape == (1037, num_out)
    assert jnp.allclose(outb, refb, atol=1e-5, rtol=1e-5)

    # Force a multi-tile (even-count) grid to exercise tiling + parallel axis.
    outm = jax.block_until_ready(
        policy_network_fc(xb, w1, b1, w2, b2, block_rows=256))
    assert outm.shape == (1037, num_out)
    assert jnp.allclose(outm, refb, atol=1e-5, rtol=1e-5)

    print("KERNEL_OK")
</pallas_src>

<mosaic_0001>
module attributes {stable_mosaic.version = 11 : i64} {
  func.func @_policy_kernel(%arg0: i32, %arg1: memref<4x128xf32, #tpu.memory_space<vmem>>, %arg2: memref<64x4xf32, #tpu.memory_space<vmem>>, %arg3: memref<64x1xf32, #tpu.memory_space<vmem>>, %arg4: memref<64x2xf32, #tpu.memory_space<vmem>>, %arg5: memref<1x2xf32, #tpu.memory_space<smem>>, %arg6: memref<2x128xf32, #tpu.memory_space<vmem>>) attributes {dimension_semantics = [#tpu.dimension_semantics<parallel>], iteration_bounds = array<i64: 1>, scalar_prefetch = 0 : i64, scratch_operands = 0 : i64, tpu.core_type = #tpu.core_type<tc>, window_params = [{transform_indices = @transform_0, window_bounds = array<i64: 4, 128>}, {pipeline_mode = #tpu.pipeline_mode<synchronous>, transform_indices = @transform_1, window_bounds = array<i64: 64, 4>}, {pipeline_mode = #tpu.pipeline_mode<synchronous>, transform_indices = @transform_2, window_bounds = array<i64: 64, 1>}, {pipeline_mode = #tpu.pipeline_mode<synchronous>, transform_indices = @transform_3, window_bounds = array<i64: 64, 2>}, {transform_indices = @transform_4, window_bounds = array<i64: 1, 2>}, {transform_indices = @transform_5, window_bounds = array<i64: 2, 128>}]} {
    %c0 = arith.constant 0 : index
    %c0_0 = arith.constant 0 : index
    %0 = vector.load %arg1[%c0, %c0_0] : memref<4x128xf32, #tpu.memory_space<vmem>>, vector<4x128xf32>
    %c0_1 = arith.constant 0 : index
    %c0_2 = arith.constant 0 : index
    %1 = vector.load %arg2[%c0_1, %c0_2] : memref<64x4xf32, #tpu.memory_space<vmem>>, vector<64x4xf32>
    %c0_3 = arith.constant 0 : index
    %c0_4 = arith.constant 0 : index
    %2 = vector.load %arg4[%c0_3, %c0_4] : memref<64x2xf32, #tpu.memory_space<vmem>>, vector<64x2xf32>
    %c0_5 = arith.constant 0 : index
    %c0_6 = arith.constant 0 : index
    %3 = vector.load %arg3[%c0_5, %c0_6] : memref<64x1xf32, #tpu.memory_space<vmem>>, vector<64x1xf32>
    %4 = vector.extract_strided_slice %1 {offsets = [0, 0], sizes = [64, 1], strides = [1, 1]} : vector<64x4xf32> to vector<64x1xf32>
    %5 = vector.extract_strided_slice %0 {offsets = [0, 0], sizes = [1, 128], strides = [1, 1]} : vector<4x128xf32> to vector<1x128xf32>
    %6 = vector.broadcast %4 : vector<64x1xf32> to vector<64x128xf32>
    %7 = vector.broadcast %5 : vector<1x128xf32> to vector<64x128xf32>
    %8 = arith.mulf %6, %7 : vector<64x128xf32>
    %9 = vector.broadcast %3 : vector<64x1xf32> to vector<64x128xf32>
    %10 = arith.addf %9, %8 : vector<64x128xf32>
    %11 = vector.extract_strided_slice %1 {offsets = [0, 1], sizes = [64, 1], strides = [1, 1]} : vector<64x4xf32> to vector<64x1xf32>
    %12 = vector.extract_strided_slice %0 {offsets = [1, 0], sizes = [1, 128], strides = [1, 1]} : vector<4x128xf32> to vector<1x128xf32>
    %13 = vector.broadcast %11 : vector<64x1xf32> to vector<64x128xf32>
    %14 = vector.broadcast %12 : vector<1x128xf32> to vector<64x128xf32>
    %15 = arith.mulf %13, %14 : vector<64x128xf32>
    %16 = arith.addf %10, %15 : vector<64x128xf32>
    %17 = vector.extract_strided_slice %1 {offsets = [0, 2], sizes = [64, 1], strides = [1, 1]} : vector<64x4xf32> to vector<64x1xf32>
    %18 = vector.extract_strided_slice %0 {offsets = [2, 0], sizes = [1, 128], strides = [1, 1]} : vector<4x128xf32> to vector<1x128xf32>
    %19 = vector.broadcast %17 : vector<64x1xf32> to vector<64x128xf32>
    %20 = vector.broadcast %18 : vector<1x128xf32> to vector<64x128xf32>
    %21 = arith.mulf %19, %20 : vector<64x128xf32>
    %22 = arith.addf %16, %21 : vector<64x128xf32>
    %23 = vector.extract_strided_slice %1 {offsets = [0, 3], sizes = [64, 1], strides = [1, 1]} : vector<64x4xf32> to vector<64x1xf32>
    %24 = vector.extract_strided_slice %0 {offsets = [3, 0], sizes = [1, 128], strides = [1, 1]} : vector<4x128xf32> to vector<1x128xf32>
    %25 = vector.broadcast %23 : vector<64x1xf32> to vector<64x128xf32>
    %26 = vector.broadcast %24 : vector<1x128xf32> to vector<64x128xf32>
    %27 = arith.mulf %25, %26 : vector<64x128xf32>
    %28 = arith.addf %22, %27 : vector<64x128xf32>
    %cst = arith.constant 0.000000e+00 : f32
    %29 = vector.broadcast %cst : f32 to vector<64x128xf32>
    %30 = arith.maximumf %28, %29 : vector<64x128xf32>
    %31 = vector.extract_strided_slice %2 {offsets = [0, 0], sizes = [64, 1], strides = [1, 1]} : vector<64x2xf32> to vector<64x1xf32>
    %32 = vector.broadcast %31 : vector<64x1xf32> to vector<64x128xf32>
    %33 = arith.mulf %30, %32 : vector<64x128xf32>
    %cst_7 = arith.constant dense<0.000000e+00> : vector<128xf32>
    %34 = vector.multi_reduction <add>, %33, %cst_7 [0] : vector<64x128xf32> to vector<128xf32>
    %35 = vector.shape_cast %34 : vector<128xf32> to vector<1x128xf32>
    %c0_8 = arith.constant 0 : index
    %c0_9 = arith.constant 0 : index
    %36 = memref.load %arg5[%c0_8, %c0_9] : memref<1x2xf32, #tpu.memory_space<smem>>
    %37 = vector.broadcast %36 : f32 to vector<1x128xf32>
    %38 = arith.addf %35, %37 : vector<1x128xf32>
    %39 = vector.extract_strided_slice %2 {offsets = [0, 1], sizes = [64, 1], strides = [1, 1]} : vector<64x2xf32> to vector<64x1xf32>
    %40 = vector.broadcast %39 : vector<64x1xf32> to vector<64x128xf32>
    %41 = arith.mulf %30, %40 : vector<64x128xf32>
    %cst_10 = arith.constant dense<0.000000e+00> : vector<128xf32>
    %42 = vector.multi_reduction <add>, %41, %cst_10 [0] : vector<64x128xf32> to vector<128xf32>
    %43 = vector.shape_cast %42 : vector<128xf32> to vector<1x128xf32>
    %c0_11 = arith.constant 0 : index
    %c1 = arith.constant 1 : index
    %44 = memref.load %arg5[%c0_11, %c1] : memref<1x2xf32, #tpu.memory_space<smem>>
    %45 = vector.broadcast %44 : f32 to vector<1x128xf32>
    %46 = arith.addf %43, %45 : vector<1x128xf32>
    %47 = arith.maximumf %38, %46 : vector<1x128xf32>
    %48 = arith.subf %38, %47 : vector<1x128xf32>
    %49 = math.exp %48 : vector<1x128xf32>
    %50 = arith.subf %46, %47 : vector<1x128xf32>
    %51 = math.exp %50 : vector<1x128xf32>
    %52 = arith.addf %49, %51 : vector<1x128xf32>
    %53 = tpu.reciprocal %52 {approx = true} : vector<1x128xf32> -> vector<1x128xf32>
    %54 = arith.mulf %52, %53 : vector<1x128xf32>
    %cst_12 = arith.constant 2.000000e+00 : f32
    %55 = vector.broadcast %cst_12 : f32 to vector<1x128xf32>
    %56 = arith.subf %55, %54 : vector<1x128xf32>
    %57 = arith.mulf %53, %56 : vector<1x128xf32>
    %58 = arith.mulf %49, %57 : vector<1x128xf32>
    %59 = arith.mulf %51, %57 : vector<1x128xf32>
    %60 = tpu.concatenate %58, %59 in 0 : vector<1x128xf32>, vector<1x128xf32> -> vector<2x128xf32>
    %c0_13 = arith.constant 0 : index
    %c0_14 = arith.constant 0 : index
    %61 = vector.load %arg6[%c0_13, %c0_14] : memref<2x128xf32, #tpu.memory_space<vmem>>, vector<2x128xf32>
    tpu.vector_store %arg6[%c0_13, %c0_14], %60 {strides = array<i32>} : memref<2x128xf32, #tpu.memory_space<vmem>>, vector<2x128xf32>,
    return
  }
  func.func @transform_0(%arg0: i32) -> (i32, i32) {
    %c0_i32 = arith.constant 0 : i32
    %c0_i32_0 = arith.constant 0 : i32
    return %c0_i32, %arg0 : i32, i32
  }
  func.func @transform_1(%arg0: i32) -> (i32, i32) {
    %c0_i32 = arith.constant 0 : i32
    %c0_i32_0 = arith.constant 0 : i32
    %c0_i32_1 = arith.constant 0 : i32
    return %c0_i32, %c0_i32_0 : i32, i32
  }
  func.func @transform_2(%arg0: i32) -> (i32, i32) {
    %c0_i32 = arith.constant 0 : i32
    %c0_i32_0 = arith.constant 0 : i32
    %c0_i32_1 = arith.constant 0 : i32
    return %c0_i32, %c0_i32_0 : i32, i32
  }
  func.func @transform_3(%arg0: i32) -> (i32, i32) {
    %c0_i32 = arith.constant 0 : i32
    %c0_i32_0 = arith.constant 0 : i32
    %c0_i32_1 = arith.constant 0 : i32
    return %c0_i32, %c0_i32_0 : i32, i32
  }
  func.func @transform_4(%arg0: i32) -> (i32, i32) {
    %c0_i32 = arith.constant 0 : i32
    %c0_i32_0 = arith.constant 0 : i32
    %c0_i32_1 = arith.constant 0 : i32
    return %c0_i32, %c0_i32_0 : i32, i32
  }
  func.func @transform_5(%arg0: i32) -> (i32, i32) {
    %c0_i32 = arith.constant 0 : i32
    %c0_i32_0 = arith.constant 0 : i32
    return %c0_i32, %arg0 : i32, i32
  }
}

</mosaic_0001>

<llo_original>
// kernel: tpu_custom_call.1
$region0: #{tpu_custom_call.1}
  #allocation0 [shape = 'u32[]', space=smem, size = 0x4, offset = 0x4, fixed_abs, tag = 'smem constant byte address 0x4 - core index']
  #allocation1 [shape = 'u32[144,128]{1,0:T(1,128)}', space=vmem, size = 0x12000, scoped, tag = 'internal scratch']
  %s0 = inlined_call_operand.vmem [shape: f32[4,128], index: 0, kind: input, shape index: {}]
  %s1 = inlined_call_operand.vmem [shape: f32[64,4], index: 1, kind: input, shape index: {}]
  %s2 = inlined_call_operand.vmem [shape: f32[64,1], index: 2, kind: input, shape index: {}]
  %s3 = inlined_call_operand.vmem [shape: f32[64,2], index: 3, kind: input, shape index: {}]
  %s4 = inlined_call_operand.vmem [shape: f32[1,2], index: 4, kind: input, shape index: {}]
  %s5 = inlined_call_operand.hbm [shape: f32[2,128], index: 5, kind: output, shape index: {}]
  %s6 = sld [smem:[#allocation0]]
  $region34: #{tpu_custom_call.1} parent=0
    _
  %s8 = ssub.s32 1, %s6
  %s9 = scalar_select 0, %s8, %s6
  $region1: #{tpu_custom_call.1} parent=0
    #allocation2 [shape = 'u8[512]{0}', space=smem, size = 0x200, scoped, tag = 'input window, operand 4, single buffered']
    #allocation3 [shape = 's32[1]{0}', space=sflag, size = 0x4, scoped, tag = 'scoped memory for tpu_custom_call.1']
    #allocation4 [shape = 's32[1]{0}', space=sflag, size = 0x4, scoped, tag = 'scoped memory for tpu_custom_call.1']
    #allocation5 [shape = 'u8[1024]{0}', space=vmem, size = 0x400, scoped, tag = 'output window, operand 0, single buffered']
    %10 = vsyncpa [#allocation4], 0
    %11 = vsyncpa [#allocation3], 0
    // Predicated region
    $region2: #{tpu_custom_call.1} parent=1 // pred_check
      _
    $region3: #{tpu_custom_call.1} parent=1 // pred_check_branch
      %13 = sbr.rel (0) target = $region5
    $region4: #{tpu_custom_call.1} parent=1 // pred_region
      _
    $region5: #{tpu_custom_call.1} parent=1 // pred_fallthru
      _
    // Predicated region
    $region6: #{tpu_custom_call.1} parent=1 // pred_check
      _
    $region7: #{tpu_custom_call.1} parent=1 // pred_check_branch
      %15 = sbr.rel (0) target = $region9
    $region8: #{tpu_custom_call.1} parent=1 // pred_region
      _
    $region9: #{tpu_custom_call.1} parent=1 // pred_fallthru
      _
    // Predicated region
    $region10: #{tpu_custom_call.1} parent=1 // pred_check
      _
    $region11: #{tpu_custom_call.1} parent=1 // pred_check_branch
      %17 = sbr.rel (0) target = $region13
    $region12: #{tpu_custom_call.1} parent=1 // pred_region
      _
    $region13: #{tpu_custom_call.1} parent=1 // pred_fallthru
      _
    // Predicated region
    $region14: #{tpu_custom_call.1} parent=1 // pred_check
      _
    $region15: #{tpu_custom_call.1} parent=1 // pred_check_branch
      %19 = sbr.rel (0) target = $region17
    $region16: #{tpu_custom_call.1} parent=1 // pred_region
      _
    $region17: #{tpu_custom_call.1} parent=1 // pred_fallthru
      _
    // Predicated region
    $region18: #{tpu_custom_call.1} parent=1 // pred_check
      _
    $region19: #{tpu_custom_call.1} parent=1 // pred_check_branch
      %21 = sbr.rel (0) target = $region21
    $region20: #{tpu_custom_call.1} parent=1 // pred_region
      %s23 = ssub.s32 16, 16
      %24 = vsyncadd [#allocation4], %s23
      %s26 = sshll.u32 %s4, 4
      %s27 = int_to_ptr.vmem [resolvable:$true] %s26
      %29 = dma.vmem_to_smem %s27, 16, [#allocation2], [#allocation4]
    $region21: #{tpu_custom_call.1} parent=1 // pred_fallthru
      _
    // Predicated region
    $region22: #{tpu_custom_call.1} parent=1 // pred_check
      _
    $region23: #{tpu_custom_call.1} parent=1 // pred_check_branch
      %31 = sbr.rel (0) target = $region25
    $region24: #{tpu_custom_call.1} parent=1 // pred_region
      %32 = dma.done [#allocation4], 16
    $region25: #{tpu_custom_call.1} parent=1 // pred_fallthru
      _
    %33 = sfence
    %v34 = vld [vmem:[%s0] sm:$0xf]
    %v35 = vld [vmem:[%s1] sm:$0xff]
    %v36 = vld [vmem:[%s1 + $0x8] sm:$0xff]
    %v37 = vld [vmem:[%s1 + $0x10] sm:$0xff]
    %v38 = vld [vmem:[%s1 + $0x18] sm:$0xff]
    %v39 = vld [vmem:[%s1 + $0x20] sm:$0xff]
    %v40 = vld [vmem:[%s1 + $0x28] sm:$0xff]
    %v41 = vld [vmem:[%s1 + $0x30] sm:$0xff]
    %v42 = vld [vmem:[%s1 + $0x38] sm:$0xff]
    %v43 = vld [vmem:[%s3] sm:$0xff]
    %v44 = vld [vmem:[%s3 + $0x8] sm:$0xff]
    %v45 = vld [vmem:[%s3 + $0x10] sm:$0xff]
    %v46 = vld [vmem:[%s3 + $0x18] sm:$0xff]
    %v47 = vld [vmem:[%s3 + $0x20] sm:$0xff]
    %v48 = vld [vmem:[%s3 + $0x28] sm:$0xff]
    %v49 = vld [vmem:[%s3 + $0x30] sm:$0xff]
    %v50 = vld [vmem:[%s3 + $0x38] sm:$0xff]
    %v51 = vld [vmem:[%s2] sm:$0xff]
    %v52 = vld [vmem:[%s2 + $0x8] sm:$0xff]
    %v53 = vld [vmem:[%s2 + $0x10] sm:$0xff]
    %v54 = vld [vmem:[%s2 + $0x18] sm:$0xff]
    %v55 = vld [vmem:[%s2 + $0x20] sm:$0xff]
    %v56 = vld [vmem:[%s2 + $0x28] sm:$0xff]
    %v57 = vld [vmem:[%s2 + $0x30] sm:$0xff]
    %v58 = vld [vmem:[%s2 + $0x38] sm:$0xff]
    %60 = vset.pattern.permute.xlu0 0
    %61 = vperm.xlu0 %60, %v35
    %v62 = vpop.permute.xlu0 %61
    %65 = vset.pattern.permute.xlu0 0
    %66 = vperm.xlu0 %65, %v36
    %v67 = vpop.permute.xlu0 %66
    %70 = vset.pattern.permute.xlu0 0
    %71 = vperm.xlu0 %70, %v37
    %v72 = vpop.permute.xlu0 %71
    %75 = vset.pattern.permute.xlu0 0
    %76 = vperm.xlu0 %75, %v38
    %v77 = vpop.permute.xlu0 %76
    %80 = vset.pattern.permute.xlu0 0
    %81 = vperm.xlu0 %80, %v39
    %v82 = vpop.permute.xlu0 %81
    %85 = vset.pattern.permute.xlu0 0
    %86 = vperm.xlu0 %85, %v40
    %v87 = vpop.permute.xlu0 %86
    %90 = vset.pattern.permute.xlu0 0
    %91 = vperm.xlu0 %90, %v41
    %v92 = vpop.permute.xlu0 %91
    %95 = vset.pattern.permute.xlu0 0
    %96 = vperm.xlu0 %95, %v42
    %v97 = vpop.permute.xlu0 %96
    %v99 = vlaneseq
    %v100 = vshrl.u32 %v99, 7
    %v101 = vsub.s32 0, %v100
    %v102 = vrot.slane %v34, %v101
    %v103 = vmul.f32 %v62, %v102
    %v104 = vmul.f32 %v67, %v102
    %v105 = vmul.f32 %v72, %v102
    %v106 = vmul.f32 %v77, %v102
    %v107 = vmul.f32 %v82, %v102
    %v108 = vmul.f32 %v87, %v102
    %v109 = vmul.f32 %v92, %v102
    %v110 = vmul.f32 %v97, %v102
    %112 = vset.pattern.permute.xlu0 0
    %113 = vperm.xlu0 %112, %v51
    %v114 = vpop.permute.xlu0 %113
    %117 = vset.pattern.permute.xlu0 0
    %118 = vperm.xlu0 %117, %v52
    %v119 = vpop.permute.xlu0 %118
    %122 = vset.pattern.permute.xlu0 0
    %123 = vperm.xlu0 %122, %v53
    %v124 = vpop.permute.xlu0 %123
    %127 = vset.pattern.permute.xlu0 0
    %128 = vperm.xlu0 %127, %v54
    %v129 = vpop.permute.xlu0 %128
    %132 = vset.pattern.permute.xlu0 0
    %133 = vperm.xlu0 %132, %v55
    %v134 = vpop.permute.xlu0 %133
    %137 = vset.pattern.permute.xlu0 0
    %138 = vperm.xlu0 %137, %v56
    %v139 = vpop.permute.xlu0 %138
    %142 = vset.pattern.permute.xlu0 0
    %143 = vperm.xlu0 %142, %v57
    %v144 = vpop.permute.xlu0 %143
    %147 = vset.pattern.permute.xlu0 0
    %148 = vperm.xlu0 %147, %v58
    %v149 = vpop.permute.xlu0 %148
    %v151 = vadd.f32 %v114, %v103
    %v152 = vadd.f32 %v119, %v104
    %v153 = vadd.f32 %v124, %v105
    %v154 = vadd.f32 %v129, %v106
    %v155 = vadd.f32 %v134, %v107
    %v156 = vadd.f32 %v139, %v108
    %v157 = vadd.f32 %v144, %v109
    %v158 = vadd.f32 %v149, %v110
    %159 = vset.pattern.permute.xlu0 1
    %160 = vperm.xlu0 %159, %v35
    %v161 = vpop.permute.xlu0 %160
    %163 = vset.pattern.permute.xlu0 1
    %164 = vperm.xlu0 %163, %v36
    %v165 = vpop.permute.xlu0 %164
    %167 = vset.pattern.permute.xlu0 1
    %168 = vperm.xlu0 %167, %v37
    %v169 = vpop.permute.xlu0 %168
    %171 = vset.pattern.permute.xlu0 1
    %172 = vperm.xlu0 %171, %v38
    %v173 = vpop.permute.xlu0 %172
    %175 = vset.pattern.permute.xlu0 1
    %176 = vperm.xlu0 %175, %v39
    %v177 = vpop.permute.xlu0 %176
    %179 = vset.pattern.permute.xlu0 1
    %180 = vperm.xlu0 %179, %v40
    %v181 = vpop.permute.xlu0 %180
    %183 = vset.pattern.permute.xlu0 1
    %184 = vperm.xlu0 %183, %v41
    %v185 = vpop.permute.xlu0 %184
    %187 = vset.pattern.permute.xlu0 1
    %188 = vperm.xlu0 %187, %v42
    %v189 = vpop.permute.xlu0 %188
    %v191 = vlaneseq
    %v192 = vshrl.u32 %v191, 7
    %v193 = vsub.s32 1, %v192
    %v194 = vrot.slane %v34, %v193
    %v195 = vmul.f32 %v161, %v194
    %v196 = vmul.f32 %v165, %v194
    %v197 = vmul.f32 %v169, %v194
    %v198 = vmul.f32 %v173, %v194
    %v199 = vmul.f32 %v177, %v194
    %v200 = vmul.f32 %v181, %v194
    %v201 = vmul.f32 %v185, %v194
    %v202 = vmul.f32 %v189, %v194
    %v203 = vadd.f32 %v151, %v195
    %v204 = vadd.f32 %v152, %v196
    %v205 = vadd.f32 %v153, %v197
    %v206 = vadd.f32 %v154, %v198
    %v207 = vadd.f32 %v155, %v199
    %v208 = vadd.f32 %v156, %v200
    %v209 = vadd.f32 %v157, %v201
    %v210 = vadd.f32 %v158, %v202
    %211 = vset.pattern.permute.xlu0 2
    %212 = vperm.xlu0 %211, %v35
    %v213 = vpop.permute.xlu0 %212
    %215 = vset.pattern.permute.xlu0 2
    %216 = vperm.xlu0 %215, %v36
    %v217 = vpop.permute.xlu0 %216
    %219 = vset.pattern.permute.xlu0 2
    %220 = vperm.xlu0 %219, %v37
    %v221 = vpop.permute.xlu0 %220
    %223 = vset.pattern.permute.xlu0 2
    %224 = vperm.xlu0 %223, %v38
    %v225 = vpop.permute.xlu0 %224
    %227 = vset.pattern.permute.xlu0 2
    %228 = vperm.xlu0 %227, %v39
    %v229 = vpop.permute.xlu0 %228
    %231 = vset.pattern.permute.xlu0 2
    %232 = vperm.xlu0 %231, %v40
    %v233 = vpop.permute.xlu0 %232
    %235 = vset.pattern.permute.xlu0 2
    %236 = vperm.xlu0 %235, %v41
    %v237 = vpop.permute.xlu0 %236
    %239 = vset.pattern.permute.xlu0 2
    %240 = vperm.xlu0 %239, %v42
    %v241 = vpop.permute.xlu0 %240
    %v243 = vlaneseq
    %v244 = vshrl.u32 %v243, 7
    %v245 = vsub.s32 2, %v244
    %v246 = vrot.slane %v34, %v245
    %v247 = vmul.f32 %v213, %v246
    %v248 = vmul.f32 %v217, %v246
    %v249 = vmul.f32 %v221, %v246
    %v250 = vmul.f32 %v225, %v246
    %v251 = vmul.f32 %v229, %v246
    %v252 = vmul.f32 %v233, %v246
    %v253 = vmul.f32 %v237, %v246
    %v254 = vmul.f32 %v241, %v246
    %v255 = vadd.f32 %v203, %v247
    %v256 = vadd.f32 %v204, %v248
    %v257 = vadd.f32 %v205, %v249
    %v258 = vadd.f32 %v206, %v250
    %v259 = vadd.f32 %v207, %v251
    %v260 = vadd.f32 %v208, %v252
    %v261 = vadd.f32 %v209, %v253
    %v262 = vadd.f32 %v210, %v254
    %263 = vset.pattern.permute.xlu0 3
    %264 = vperm.xlu0 %263, %v35
    %v265 = vpop.permute.xlu0 %264
    %267 = vset.pattern.permute.xlu0 3
    %268 = vperm.xlu0 %267, %v36
    %v269 = vpop.permute.xlu0 %268
    %271 = vset.pattern.permute.xlu0 3
    %272 = vperm.xlu0 %271, %v37
    %v273 = vpop.permute.xlu0 %272
    %275 = vset.pattern.permute.xlu0 3
    %276 = vperm.xlu0 %275, %v38
    %v277 = vpop.permute.xlu0 %276
    %279 = vset.pattern.permute.xlu0 3
    %280 = vperm.xlu0 %279, %v39
    %v281 = vpop.permute.xlu0 %280
    %283 = vset.pattern.permute.xlu0 3
    %284 = vperm.xlu0 %283, %v40
    %v285 = vpop.permute.xlu0 %284
    %287 = vset.pattern.permute.xlu0 3
    %288 = vperm.xlu0 %287, %v41
    %v289 = vpop.permute.xlu0 %288
    %291 = vset.pattern.permute.xlu0 3
    %292 = vperm.xlu0 %291, %v42
    %v293 = vpop.permute.xlu0 %292
    %v295 = vlaneseq
    %v296 = vshrl.u32 %v295, 7
    %v297 = vsub.s32 3, %v296
    %v298 = vrot.slane %v34, %v297
    %v299 = vmul.f32 %v265, %v298
    %v300 = vmul.f32 %v269, %v298
    %v301 = vmul.f32 %v273, %v298
    %v302 = vmul.f32 %v277, %v298
    %v303 = vmul.f32 %v281, %v298
    %v304 = vmul.f32 %v285, %v298
    %v305 = vmul.f32 %v289, %v298
    %v306 = vmul.f32 %v293, %v298
    %v307 = vadd.f32 %v255, %v299
    %v308 = vadd.f32 %v256, %v300
    %v309 = vadd.f32 %v257, %v301
    %v310 = vadd.f32 %v258, %v302
    %v311 = vadd.f32 %v259, %v303
    %v312 = vadd.f32 %v260, %v304
    %v313 = vadd.f32 %v261, %v305
    %v314 = vadd.f32 %v262, %v306
    %v315 = vmax.f32 %v307, 0.0
    %v316 = vmax.f32 %v308, 0.0
    %v317 = vmax.f32 %v309, 0.0
    %v318 = vmax.f32 %v310, 0.0
    %v319 = vmax.f32 %v311, 0.0
    %v320 = vmax.f32 %v312, 0.0
    %v321 = vmax.f32 %v313, 0.0
    %v322 = vmax.f32 %v314, 0.0
    %324 = vset.pattern.permute.xlu0 0
    %325 = vperm.xlu0 %324, %v43
    %v326 = vpop.permute.xlu0 %325
    %329 = vset.pattern.permute.xlu0 0
    %330 = vperm.xlu0 %329, %v44
    %v331 = vpop.permute.xlu0 %330
    %334 = vset.pattern.permute.xlu0 0
    %335 = vperm.xlu0 %334, %v45
    %v336 = vpop.permute.xlu0 %335
    %339 = vset.pattern.permute.xlu0 0
    %340 = vperm.xlu0 %339, %v46
    %v341 = vpop.permute.xlu0 %340
    %344 = vset.pattern.permute.xlu0 0
    %345 = vperm.xlu0 %344, %v47
    %v346 = vpop.permute.xlu0 %345
    %349 = vset.pattern.permute.xlu0 0
    %350 = vperm.xlu0 %349, %v48
    %v351 = vpop.permute.xlu0 %350
    %354 = vset.pattern.permute.xlu0 0
    %355 = vperm.xlu0 %354, %v49
    %v356 = vpop.permute.xlu0 %355
    %359 = vset.pattern.permute.xlu0 0
    %360 = vperm.xlu0 %359, %v50
    %v361 = vpop.permute.xlu0 %360
    %v363 = vmul.f32 %v315, %v326
    %v364 = vmul.f32 %v316, %v331
    %v365 = vmul.f32 %v317, %v336
    %v366 = vmul.f32 %v318, %v341
    %v367 = vmul.f32 %v319, %v346
    %v368 = vmul.f32 %v320, %v351
    %v369 = vmul.f32 %v321, %v356
    %v370 = vmul.f32 %v322, %v361
    %v371 = vadd.f32 %v363, %v364
    %v372 = vadd.f32 %v371, %v365
    %v373 = vadd.f32 %v372, %v366
    %v374 = vadd.f32 %v373, %v367
    %v375 = vadd.f32 %v374, %v368
    %v376 = vadd.f32 %v375, %v369
    %v377 = vadd.f32 %v376, %v370
    %v378 = vrot.slane %v377, 4
    %v379 = vadd.f32 %v377, %v378
    %v380 = vrot.slane %v379, 2
    %v381 = vadd.f32 %v379, %v380
    %v382 = vrot.slane %v381, 1
    %v383 = vadd.f32 %v381, %v382
    %s384 = sld [smem:[#allocation2]]
    %v385 = vstv %s384
    %v386 = vadd.f32 %v383, %v385
    %387 = vset.pattern.permute.xlu0 1
    %388 = vperm.xlu0 %387, %v43
    %v389 = vpop.permute.xlu0 %388
    %391 = vset.pattern.permute.xlu0 1
    %392 = vperm.xlu0 %391, %v44
    %v393 = vpop.permute.xlu0 %392
    %395 = vset.pattern.permute.xlu0 1
    %396 = vperm.xlu0 %395, %v45
    %v397 = vpop.permute.xlu0 %396
    %399 = vset.pattern.permute.xlu0 1
    %400 = vperm.xlu0 %399, %v46
    %v401 = vpop.permute.xlu0 %400
    %403 = vset.pattern.permute.xlu0 1
    %404 = vperm.xlu0 %403, %v47
    %v405 = vpop.permute.xlu0 %404
    %407 = vset.pattern.permute.xlu0 1
    %408 = vperm.xlu0 %407, %v48
    %v409 = vpop.permute.xlu0 %408
    %411 = vset.pattern.permute.xlu0 1
    %412 = vperm.xlu0 %411, %v49
    %v413 = vpop.permute.xlu0 %412
    %415 = vset.pattern.permute.xlu0 1
    %416 = vperm.xlu0 %415, %v50
    %v417 = vpop.permute.xlu0 %416
    %v419 = vmul.f32 %v315, %v389
    %v420 = vmul.f32 %v316, %v393
    %v421 = vmul.f32 %v317, %v397
    %v422 = vmul.f32 %v318, %v401
    %v423 = vmul.f32 %v319, %v405
    %v424 = vmul.f32 %v320, %v409
    %v425 = vmul.f32 %v321, %v413
    %v426 = vmul.f32 %v322, %v417
    %v427 = vadd.f32 %v419, %v420
    %v428 = vadd.f32 %v427, %v421
    %v429 = vadd.f32 %v428, %v422
    %v430 = vadd.f32 %v429, %v423
    %v431 = vadd.f32 %v430, %v424
    %v432 = vadd.f32 %v431, %v425
    %v433 = vadd.f32 %v432, %v426
    %v434 = vrot.slane %v433, 4
    %v435 = vadd.f32 %v433, %v434
    %v436 = vrot.slane %v435, 2
    %v437 = vadd.f32 %v435, %v436
    %v438 = vrot.slane %v437, 1
    %v439 = vadd.f32 %v437, %v438
    %s440 = sld [smem:[#allocation2 + $0x1]]
    %v441 = vstv %s440
    %v442 = vadd.f32 %v439, %v441
    %v443 = vmax.f32 %v386, %v442
    %v444 = vsub.f32 %v386, %v443
    %v445 = vmul.f32 %v444, 1.442695
    %v446 = vpow.pop %v445
    %v447 = vsub.f32 %v442, %v443
    %v448 = vmul.f32 %v447, 1.442695
    %v449 = vpow.pop %v448
    %v450 = vadd.f32 %v446, %v449
    %v451 = vrcp.pop %v450
    %v452 = vmul.f32 %v450, %v451
    %v453 = vsub.f32 2.0, %v452
    %v454 = vmul.f32 %v451, %v453
    %v455 = vmul.f32 %v446, %v454
    %v456 = vmul.f32 %v449, %v454
    %vm457 = vcmask 1040384
    %v458 = vsel %vm457, %v455, %v456
    %459 = vst [vmem:[#allocation5] sm:$0x3] %v458
    // Predicated region
    $region26: #{tpu_custom_call.1} parent=1 // pred_check
      _
    $region27: #{tpu_custom_call.1} parent=1 // pred_check_branch
      %461 = sbr.rel (0) target = $region29
    $region28: #{tpu_custom_call.1} parent=1 // pred_region
      %s463 = ssub.s32 32, 32
      %464 = vsyncadd [#allocation3], %s463
      %s466 = sshll.u32 [#allocation5], 4
      %s467 = int_to_ptr.vmem [resolvable:$true] %s466
      %469 = dma.vmem_to_hbm [thread:$0]  %s467, 32, %s5, [#allocation3]
    $region29: #{tpu_custom_call.1} parent=1 // pred_fallthru
      _
    // Predicated region
    $region30: #{tpu_custom_call.1} parent=1 // pred_check
      _
    $region31: #{tpu_custom_call.1} parent=1 // pred_check_branch
      %471 = sbr.rel (0) target = $region33
    $region32: #{tpu_custom_call.1} parent=1 // pred_region
      %472 = dma.done [#allocation3], 32
    $region33: #{tpu_custom_call.1} parent=1 // pred_fallthru
      _
    %473 = vsyncpa [#allocation3], 1
    %474 = vsyncpa [#allocation4], 1

</llo_original>
